<compile_context>
chip_gen: v7x
topology: tpu7x:2x2x1
jax: 0.10.0
libtpu: 0.0.40
codegen_flags: <defaults>
</compile_context>

<pallas_src>
import math

import jax
import jax.numpy as jnp
from jax.experimental import pallas as pl
from jax.experimental.pallas import tpu as pltpu

_RMS_EPS = 1e-6

# ---------------------------------------------------------------------------
# Generation-aware configuration (VMEM budget + tile targets)
# ---------------------------------------------------------------------------

_CFG = None


def _hw_config():
    """Derive VMEM budget and tile targets from the actual chip (v5e/v6e vs v7x)."""
    global _CFG
    if _CFG is None:
        cap = 128 * 1024 * 1024
        try:
            info = pltpu.get_tpu_info()
            c = getattr(info, "vmem_capacity_bytes", None)
            if c:
                cap = int(c)
        except Exception:
            pass
        if cap >= 100 * 1024 * 1024:
            # v5e / v6e: 128 MiB physical VMEM -> bigger tiles, ~96 MiB scoped budget.
            _CFG = dict(vmem=96 * 1024 * 1024, row=256, col=512, mlp_k=512, unembed_row=1024)
        else:
            # v7x: 64 MiB physical VMEM -> leave headroom, smaller MLP k-tile.
            _CFG = dict(vmem=48 * 1024 * 1024, row=256, col=256, mlp_k=128, unembed_row=512)
    return _CFG


def _cparams(dims):
    return pltpu.CompilerParams(dimension_semantics=dims,
                                vmem_limit_bytes=_hw_config()["vmem"])


# ---------------------------------------------------------------------------
# Robust tiling: never fall back to whole-axis blocks.  Rows/cols are padded up to a
# clean multiple of the chosen tile (padding is a no-op for already-aligned shapes).
# ---------------------------------------------------------------------------

def _round_up(x, m):
    return ((x + m - 1) // m) * m


def _row_plan(t, target):
    """(row_tile, padded_rows): row_tile is a multiple of 8 dividing padded_rows."""
    tp = _round_up(max(t, 8), 8)
    tm = min(target, tp)
    if tp % tm:
        padded = _round_up(tp, tm)
        if padded - tp <= tp // 4:
            tp = padded
        else:
            # padding would waste >25% -> use the largest multiple-of-8 divisor instead
            best = 8
            for cand in range(tm, 7, -8):
                if tp % cand == 0:
                    best = cand
                    break
            tm = best
    # v7x megacore nicety: prefer >= 2 row tiles when rows carry the parallelism.
    if tp // tm < 2 and tp >= 32 and (tp // 2) % 8 == 0:
        tm = tp // 2
    return tm, tp


def _col_plan(n, target):
    """(col_tile, padded_cols): both multiples of 128, col_tile divides padded_cols."""
    np_ = _round_up(max(n, 128), 128)
    tn = math.gcd(np_, target)   # >= 128 since both are multiples of 128
    return tn, np_


def _pad2d(x, rows, cols):
    r, c = x.shape
    if r == rows and c == cols:
        return x
    return jnp.pad(x, ((0, rows - r), (0, cols - c)))


# ---------------------------------------------------------------------------
# Fused RMSNorm + matmul   (input_ln -> QKV projection,  final_norm -> unembedding)
# ---------------------------------------------------------------------------

def _rms_matmul_kernel(x_ref, g_ref, w_ref, o_ref, xn_ref):
    # Normalize the row tile once (j == 0), reuse the bf16 result for every column tile.
    @pl.when(pl.program_id(1) == 0)
    def _():
        x = x_ref[...].astype(jnp.float32)
        var = jnp.mean(x * x, axis=-1, keepdims=True)
        xn_ref[...] = (x * jax.lax.rsqrt(var + _RMS_EPS)
                       * g_ref[...].astype(jnp.float32)).astype(xn_ref.dtype)

    o_ref[...] = jnp.dot(xn_ref[...], w_ref[...],
                         preferred_element_type=jnp.float32).astype(o_ref.dtype)


def rms_matmul(x2d, gamma_1d, w_in_out, out_dtype=jnp.float32,
               row_tile=None, col_tile=None):
    cfg = _hw_config()
    row_tile = row_tile or cfg["row"]
    col_tile = col_tile or cfg["col"]
    t, d = x2d.shape
    n = w_in_out.shape[1]
    tm, tp = _row_plan(t, row_tile)
    tn, np_ = _col_plan(n, col_tile)

    xp = _pad2d(x2d, tp, d)
    wp = _pad2d(w_in_out, d, np_)

    out = pl.pallas_call(
        _rms_matmul_kernel,
        out_shape=jax.ShapeDtypeStruct((tp, np_), out_dtype),
        grid_spec=pltpu.PrefetchScalarGridSpec(
            num_scalar_prefetch=0,
            grid=(tp // tm, np_ // tn),
            in_specs=[
                pl.BlockSpec((tm, d), lambda i, j: (i, 0)),   # activations: full-D row tile
                pl.BlockSpec((1, d), lambda i, j: (0, 0)),    # gamma replicated
                pl.BlockSpec((d, tn), lambda i, j: (0, j)),   # weight streams over N
            ],
            out_specs=pl.BlockSpec((tm, tn), lambda i, j: (i, j)),
            scratch_shapes=[pltpu.VMEM((tm, d), jnp.bfloat16)],
        ),
        compiler_params=_cparams(("parallel", "arbitrary")),
    )(xp, gamma_1d, wp)
    if tp != t or np_ != n:
        out = out[:t, :n]
    return out


# ---------------------------------------------------------------------------
# Flash-style causal attention: per-(batch, head, q-tile) output, online softmax over
# KV tiles, causal tile skipping.  Head split via BlockSpec index_map directly on the
# fused (B, S, 3D) QKV slab — no XLA reshape/transpose copies.  1/sqrt(hd) is folded
# into W_q in prepare_params().
# ---------------------------------------------------------------------------

def pallas_attention(qkv_bs3d, num_heads, head_dim, *, kv_tile=256):
    b, s, d3 = qkv_bs3d.shape
    d = d3 // 3
    h = num_heads
    assert head_dim % 128 == 0, "head_dim must be a multiple of 128"  # TODO(synk): smaller head dims

    tq, sp = _row_plan(s, kv_tile)
    tk = tq
    qkv = qkv_bs3d if sp == s else jnp.pad(qkv_bs3d, ((0, 0), (0, sp - s), (0, 0)))
    nq = sp // tq
    nk = sp // tk

    def kernel(q_ref, k_ref, v_ref, o_ref, m_sc, l_sc, acc_sc):
        qi = pl.program_id(2)
        ki = pl.program_id(3)

        @pl.when(ki == 0)
        def _():
            m_sc[...] = jnp.full_like(m_sc, -1e30)
            l_sc[...] = jnp.zeros_like(l_sc)
            acc_sc[...] = jnp.zeros_like(acc_sc)

        # Causal tile skip: a KV tile entirely in the future of this Q tile contributes nothing.
        @pl.when(ki * tk <= qi * tq + (tq - 1))
        def _():
            q = q_ref[0]                         # (tq, hd) bf16, scale pre-folded into W_q
            k = k_ref[0]                         # (tk, hd) bf16
            sc = jax.lax.dot_general(q, k, (((1,), (1,)), ((), ())),
                                     preferred_element_type=jnp.float32)
            rows = jax.lax.broadcasted_iota(jnp.int32, (tq, tk), 0) + qi * tq
            cols = jax.lax.broadcasted_iota(jnp.int32, (tq, tk), 1) + ki * tk
            sc = jnp.where(rows >= cols, sc, -1e30)
            m_new = jnp.maximum(m_sc[...], jnp.max(sc, axis=-1, keepdims=True))
            alpha = jnp.exp(m_sc[...] - m_new)
            p = jnp.exp(sc - m_new)
            l_sc[...] = alpha * l_sc[...] + jnp.sum(p, axis=-1, keepdims=True)
            acc_sc[...] = alpha * acc_sc[...] + jnp.dot(
                p.astype(jnp.bfloat16), v_ref[0], preferred_element_type=jnp.float32)
            m_sc[...] = m_new

        @pl.when(ki == pl.num_programs(3) - 1)
        def _():
            o_ref[0] = (acc_sc[...] / l_sc[...]).astype(o_ref.dtype)

    out = pl.pallas_call(
        kernel,
        out_shape=jax.ShapeDtypeStruct((b, sp, d), jnp.bfloat16),
        grid_spec=pltpu.PrefetchScalarGridSpec(
            num_scalar_prefetch=0,
            grid=(b, h, nq, nk),
            in_specs=[
                pl.BlockSpec((1, tq, head_dim), lambda bi, hi, qi, ki: (bi, qi, hi)),          # Q head
                pl.BlockSpec((1, tk, head_dim), lambda bi, hi, qi, ki: (bi, ki, h + hi)),      # K head
                pl.BlockSpec((1, tk, head_dim), lambda bi, hi, qi, ki: (bi, ki, 2 * h + hi)),  # V head
            ],
            out_specs=pl.BlockSpec((1, tq, head_dim), lambda bi, hi, qi, ki: (bi, qi, hi)),
            scratch_shapes=[pltpu.VMEM((tq, 1), jnp.float32),
                            pltpu.VMEM((tq, 1), jnp.float32),
                            pltpu.VMEM((tq, head_dim), jnp.float32)],
        ),
        compiler_params=_cparams(("parallel", "parallel", "parallel", "arbitrary")),
    )(qkv, qkv, qkv)
    return out if sp == s else out[:, :s, :]


# ---------------------------------------------------------------------------
# o_proj fused with the residual add; optionally also emits the pre-residual attn
# activations (bf16) that AttnWrapper records (only when decodings are needed).
# ---------------------------------------------------------------------------

def _make_oproj_kernel(emit_attn):
    def kernel(x_ref, w_ref, r_ref, *out_refs):
        acc = jnp.dot(x_ref[...], w_ref[...], preferred_element_type=jnp.float32)
        if emit_attn:
            hid_ref, attn_ref = out_refs
            attn_ref[...] = acc.astype(attn_ref.dtype)   # pre-residual attn activation
        else:
            (hid_ref,) = out_refs
        hid_ref[...] = r_ref[...] + acc                  # residual add fused into epilogue
    return kernel


def oproj_residual(ctx2d, wo_in_out, resid2d, *, emit_attn=False):
    cfg = _hw_config()
    t, d = ctx2d.shape
    n = wo_in_out.shape[1]
    tm, tp = _row_plan(t, cfg["row"])
    tn, np_ = _col_plan(n, cfg["col"])

    xp = _pad2d(ctx2d, tp, d)
    wp = _pad2d(wo_in_out, d, np_)
    rp = _pad2d(resid2d, tp, np_)

    out_shapes = [jax.ShapeDtypeStruct((tp, np_), jnp.float32)]
    out_specs = [pl.BlockSpec((tm, tn), lambda i, j: (i, j))]
    if emit_attn:
        out_shapes.append(jax.ShapeDtypeStruct((tp, np_), jnp.bfloat16))
        out_specs.append(pl.BlockSpec((tm, tn), lambda i, j: (i, j)))

    res = pl.pallas_call(
        _make_oproj_kernel(emit_attn),
        out_shape=tuple(out_shapes) if emit_attn else out_shapes[0],
        grid_spec=pltpu.PrefetchScalarGridSpec(
            num_scalar_prefetch=0,
            grid=(tp // tm, np_ // tn),
            in_specs=[
                pl.BlockSpec((tm, d), lambda i, j: (i, 0)),
                pl.BlockSpec((d, tn), lambda i, j: (0, j)),
                pl.BlockSpec((tm, tn), lambda i, j: (i, j)),
            ],
            out_specs=tuple(out_specs) if emit_attn else out_specs[0],
        ),
        compiler_params=_cparams(("parallel", "parallel")),
    )(xp, wp, rp)

    hid, attn = (res if emit_attn else (res, None))
    if tp != t or np_ != n:
        hid = hid[:t, :n]
        attn = attn[:t, :n] if attn is not None else None
    return hid, attn


# ---------------------------------------------------------------------------
# Fused post-attn RMSNorm + SwiGLU MLP, accumulated over intermediate-dim (M) chunks,
# residual fused into the finalize.  Optionally also emits the raw MLP output (bf16,
# for decodings) and/or fuses the masked steering-vector add into the finalize.
# ---------------------------------------------------------------------------

def _make_mlp_kernel(emit_mlp, steer):
    def kernel(*refs):
        idx = 0
        if steer:
            after_ref = refs[idx]; idx += 1
        h_ref, g_ref, wg_ref, wu_ref, wd_ref = refs[idx:idx + 5]; idx += 5
        if steer:
            pos_ref, vec_ref = refs[idx:idx + 2]; idx += 2
        blk_ref = refs[idx]; idx += 1
        if emit_mlp:
            mlp_ref = refs[idx]; idx += 1
        xn_ref, acc_ref = refs[idx:idx + 2]

        k = pl.program_id(1)

        @pl.when(k == 0)
        def _():
            x = h_ref[...].astype(jnp.float32)
            var = jnp.mean(x * x, axis=-1, keepdims=True)
            xn_ref[...] = (x * jax.lax.rsqrt(var + _RMS_EPS)
                           * g_ref[...].astype(jnp.float32)).astype(xn_ref.dtype)
            acc_ref[...] = jnp.zeros_like(acc_ref)

        xn = xn_ref[...]
        g = jnp.dot(xn, wg_ref[...], preferred_element_type=jnp.float32)
        u = jnp.dot(xn, wu_ref[...], preferred_element_type=jnp.float32)
        hmid = (g * jax.nn.sigmoid(g) * u).astype(jnp.bfloat16)
        acc_ref[...] += jnp.dot(hmid, wd_ref[...], preferred_element_type=jnp.float32)

        @pl.when(k == pl.num_programs(1) - 1)
        def _():
            mlp = acc_ref[...]
            if emit_mlp:
                mlp_ref[...] = mlp.astype(mlp_ref.dtype)
            blk = h_ref[...] + mlp
            if steer:
                v = vec_ref[...]
                add = jnp.where(pos_ref[...] > after_ref[0], 2.0 * v, v)
                blk = blk + add
            blk_ref[...] = blk.astype(blk_ref.dtype)
    return kernel


def mlp_block(hidden2d, gamma_1d, wg, wu, wd, *, emit_mlp=False, steer=None):
    cfg = _hw_config()
    t, d = hidden2d.shape
    m = wg.shape[1]
    tm, tp = _row_plan(t, cfg["row"])
    tk, mp = _col_plan(m, cfg["mlp_k"])

    hp = _pad2d(hidden2d, tp, d)
    wgp = _pad2d(wg, d, mp)
    wup = _pad2d(wu, d, mp)
    wdp = _pad2d(wd, mp, d)

    n_pref = 1 if steer is not None else 0

    def im_h(i, k, *_):   return (i, 0)
    def im_g(i, k, *_):   return (0, 0)
    def im_wgu(i, k, *_): return (0, k)
    def im_wd(i, k, *_):  return (k, 0)
    def im_out(i, k, *_): return (i, 0)

    in_specs = [
        pl.BlockSpec((tm, d), im_h),
        pl.BlockSpec((1, d), im_g),
        pl.BlockSpec((d, tk), im_wgu),
        pl.BlockSpec((d, tk), im_wgu),
        pl.BlockSpec((tk, d), im_wd),
    ]
    inputs = [hp, gamma_1d, wgp, wup, wdp]
    if steer is not None:
        pos2d, vec2d, after1 = steer
        in_specs += [pl.BlockSpec((tm, 1), im_h), pl.BlockSpec((1, d), im_g)]
        inputs += [_pad2d(pos2d, tp, 1), vec2d]

    out_shapes = [jax.ShapeDtypeStruct((tp, d), jnp.float32)]
    out_specs = [pl.BlockSpec((tm, d), im_out)]
    if emit_mlp:
        out_shapes.append(jax.ShapeDtypeStruct((tp, d), jnp.bfloat16))
        out_specs.append(pl.BlockSpec((tm, d), im_out))

    call = pl.pallas_call(
        _make_mlp_kernel(emit_mlp, steer is not None),
        out_shape=tuple(out_shapes) if emit_mlp else out_shapes[0],
        grid_spec=pltpu.PrefetchScalarGridSpec(
            num_scalar_prefetch=n_pref,
            grid=(tp // tm, mp // tk),
            in_specs=in_specs,
            out_specs=tuple(out_specs) if emit_mlp else out_specs[0],
            scratch_shapes=[pltpu.VMEM((tm, d), jnp.bfloat16),   # normalized input, reused per k
                            pltpu.VMEM((tm, d), jnp.float32)],   # down-proj accumulator
        ),
        compiler_params=_cparams(("parallel", "arbitrary")),
    )
    args = ([steer[2]] if steer is not None else []) + inputs
    res = call(*args)

    if emit_mlp:
        blk, mlp = res
    else:
        blk, mlp = res, None
    if tp != t:
        blk = blk[:t]
        mlp = mlp[:t] if mlp is not None else None
    return blk, mlp


# ---------------------------------------------------------------------------
# Standalone masked steering add (only used when the pre-steering activations are also
# needed for the dot-product branch):  out = x + where(pos > after, 2*v, v)
# ---------------------------------------------------------------------------

def _masked_add_kernel(after_ref, x_ref, pos_ref, v_ref, o_ref):
    v = v_ref[...]
    mask = pos_ref[...] > after_ref[0]                      # (tm, 1)
    o_ref[...] = x_ref[...] + jnp.where(mask, 2.0 * v, v)   # broadcast to (tm, D)


def masked_steering_add(x2d, pos2d, vec2d, after1):
    cfg = _hw_config()
    t, d = x2d.shape
    tm, tp = _row_plan(t, cfg["row"])
    xp = _pad2d(x2d, tp, d)
    pp = _pad2d(pos2d, tp, 1)
    out = pl.pallas_call(
        _masked_add_kernel,
        out_shape=jax.ShapeDtypeStruct((tp, d), jnp.float32),
        grid_spec=pltpu.PrefetchScalarGridSpec(
            num_scalar_prefetch=1,                           # `after` lives in SMEM
            grid=(tp // tm,),
            in_specs=[
                pl.BlockSpec((tm, d), lambda i, after: (i, 0)),
                pl.BlockSpec((tm, 1), lambda i, after: (i, 0)),
                pl.BlockSpec((1, d), lambda i, after: (0, 0)),
            ],
            out_specs=pl.BlockSpec((tm, d), lambda i, after: (i, 0)),
        ),
        compiler_params=_cparams(("parallel",)),
    )(after1, xp, pp, vec2d)
    return out if tp == t else out[:t]


# ---------------------------------------------------------------------------
# Synthetic decoder block (stands in for the opaque `block` argument)
# ---------------------------------------------------------------------------

def block_forward(x, p, *, need_attn_out=False, need_mlp_out=False, steer=None):
    """Returns (block_out2d, attn_out2d|None, hidden2d, mlp_out2d|None) mimicking a LLaMA
    decoder layer.  attn_out is what AttnWrapper records (post o_proj, pre residual);
    block_out already includes the fused steering add if `steer` is given."""
    b, s, d = x.shape
    h = p["num_heads"]
    hd = d // h
    t = b * s
    x2 = x.reshape(t, d)

    # fused input RMSNorm + QKV projection (W_q|W_k|W_v concatenated -> single streamed matmul)
    qkv = rms_matmul(x2, p["input_ln"], p["wqkv"], out_dtype=jnp.bfloat16)     # (T, 3D) bf16
    ctx = pallas_attention(qkv.reshape(b, s, 3 * d), h, hd)                    # (B, S, D) bf16

    # o_proj + residual; attn_out (pre-residual, bf16) only when decodings need it
    hidden2, attn2 = oproj_residual(ctx.reshape(t, d), p["wo"], x2, emit_attn=need_attn_out)

    # fused post-attn RMSNorm + SwiGLU MLP + residual (+ optional fused steering add)
    block2, mlp2 = mlp_block(hidden2, p["post_ln"], p["w_gate"], p["w_up"], p["w_down"],
                             emit_mlp=need_mlp_out, steer=steer)
    return block2, attn2, hidden2, mlp2


# ---------------------------------------------------------------------------
# BlockOutputWrapper.forward
# ---------------------------------------------------------------------------

def block_output_wrapper_forward(hidden_states, position_ids, params,
                                 add_activations=None, after_position=None,
                                 calc_dot_product_with=None,
                                 save_internal_decodings=False):
    b, s, d = hidden_states.shape
    t = b * s
    v = params["unembed"].shape[1]
    cfg = _hw_config()
    results = {}

    need_sides = save_internal_decodings
    # Fuse the steering add into the MLP epilogue unless we also need the
    # pre-steering activations (dot-product branch reads them).
    fuse_steer = (add_activations is not None) and (calc_dot_product_with is None)

    pos2d = vec2d = after = None
    if add_activations is not None:
        if after_position is None:
            after = (jnp.min(position_ids).astype(jnp.int32) - 1).reshape(1)   # .min().item() - 1
        else:
            after = jnp.asarray(after_position, dtype=jnp.int32).reshape(1)
        pos2d = position_ids.reshape(t, 1).astype(jnp.int32)
        vec2d = add_activations.reshape(1, d).astype(jnp.float32)

    steer = (pos2d, vec2d, after) if fuse_steer else None

    block2, attn2, hidden2, mlp2 = block_forward(
        hidden_states, params,
        need_attn_out=need_sides, need_mlp_out=need_sides, steer=steer)

    # --- add_activations branch (mask*v + v  ==  where(pos > after, 2v, v)) ---
    if fuse_steer:
        out2 = block2                                   # steering already fused in the kernel
    elif add_activations is not None:
        out2 = masked_steering_add(block2, pos2d, vec2d, after)
    else:
        out2 = block2
    output0 = out2.reshape(b, s, d)

    # --- calc_dot_product_with branch (uses PRE-steering activations) ---
    dot_last = None
    dot_product = None
    if calc_dot_product_with is not None:
        last = block2.reshape(b, s, d)[0, -1, :]                               # (D,) f32
        # D-length reduction is dwarfed by kernel-launch overhead -> leave to XLA/VPU.
        dot_product = jnp.dot(last, calc_dot_product_with)
        if save_internal_decodings:
            dot_last = last            # fold the 1-row decode into the batched slab below
        else:
            dec = rms_matmul(last.reshape(1, d), params["final_norm"], params["unembed"],
                             out_dtype=jnp.float32, row_tile=cfg["unembed_row"])
            top_token_id = jnp.argmax(dec[0])
            # TODO(synk): tokenizer.decode(top_token_id) has no JAX equivalent; raw id kept.
            results["dot_products"] = (top_token_id, dot_product)

    if not save_internal_decodings:
        return output0, results

    # --- save_internal_decodings: one bf16 batched norm+unembed pass (W streamed once) ---
    pieces = [out2.astype(jnp.bfloat16),        # unembed(norm(output[0]))
              attn2,                            # unembed(norm(attn activations)), already bf16
              hidden2.astype(jnp.bfloat16),     # unembed(norm(attn_out + args[0]))
              mlp2]                             # unembed(norm(mlp(post_ln(resid)))), already bf16
    if dot_last is not None:
        pieces.append(dot_last.reshape(1, d).astype(jnp.bfloat16))  # last-token decode row
    slab = jnp.concatenate(pieces, axis=0)
    decoded = rms_matmul(slab, params["final_norm"], params["unembed"],
                         out_dtype=jnp.float32, row_tile=cfg["unembed_row"])    # (4T(+1), V)
    main = decoded[:4 * t].reshape(4, b, s, v)
    results["block_output_unembedded"] = main[0]
    results["attn_out_unembedded"] = main[1]
    results["intermediate_resid_unembedded"] = main[2]
    results["mlp_out_unembedded"] = main[3]
    if dot_last is not None:
        top_token_id = jnp.argmax(decoded[4 * t])
        # TODO(synk): tokenizer.decode(top_token_id) has no JAX equivalent; raw id kept.
        results["dot_products"] = (top_token_id, dot_product)
    return output0, results


# ---------------------------------------------------------------------------
# Deterministic parameter init (PyTorch (out, in) convention) + one-time preparation
# ---------------------------------------------------------------------------

def init_raw_params(key, d, h, vocab, m):
    ks = jax.random.split(key, 8)
    sc = 0.02
    return dict(
        num_heads=h,
        input_ln=jnp.ones((d,), jnp.float32),
        post_ln=jnp.ones((d,), jnp.float32),
        final_norm=jnp.ones((d,), jnp.float32),
        wq=jax.random.normal(ks[0], (d, d), jnp.float32) * sc,
        wk=jax.random.normal(ks[1], (d, d), jnp.float32) * sc,
        wv=jax.random.normal(ks[2], (d, d), jnp.float32) * sc,
        wo=jax.random.normal(ks[3], (d, d), jnp.float32) * sc,
        w_gate=jax.random.normal(ks[4], (m, d), jnp.float32) * sc,
        w_up=jax.random.normal(ks[5], (m, d), jnp.float32) * sc,
        w_down=jax.random.normal(ks[6], (d, m), jnp.float32) * sc,
        unembed=jax.random.normal(ks[7], (vocab, d), jnp.float32) * sc,   # (V, D) like nn.Linear
    )


def prepare_params(raw):
    """One-time weight prep: transpose to (in, out), cast to bf16, fuse QKV and fold
    1/sqrt(head_dim) into W_q.  No per-forward transposes or rescales."""
    d = raw["wq"].shape[1]
    h = raw["num_heads"]
    head_dim = d // h
    scale = 1.0 / math.sqrt(head_dim)
    to_in_out_bf16 = lambda w: jnp.asarray(w).T.astype(jnp.bfloat16)
    wqkv = jnp.concatenate([raw["wq"] * scale, raw["wk"], raw["wv"]], axis=0)   # (3D, D)
    return dict(
        num_heads=h,
        input_ln=raw["input_ln"].reshape(1, d).astype(jnp.float32),
        post_ln=raw["post_ln"].reshape(1, d).astype(jnp.float32),
        final_norm=raw["final_norm"].reshape(1, d).astype(jnp.float32),
        wqkv=to_in_out_bf16(wqkv),               # (D, 3D)
        wo=to_in_out_bf16(raw["wo"]),            # (D, D)
        w_gate=to_in_out_bf16(raw["w_gate"]),    # (D, M)
        w_up=to_in_out_bf16(raw["w_up"]),        # (D, M)
        w_down=to_in_out_bf16(raw["w_down"]),    # (M, D)
        unembed=to_in_out_bf16(raw["unembed"]),  # (D, V)
    )


# ---------------------------------------------------------------------------
# Demo
# ---------------------------------------------------------------------------

if __name__ == "__main__":
    # head_dim = D // H = 128 so per-head attention blocks are (sublane, lane) aligned.
    B, S, D, H, V, M = 2, 8, 256, 2, 512, 512

    key = jax.random.PRNGKey(0)
    k_params, k_x, k_add, k_dot = jax.random.split(key, 4)

    raw_params = init_raw_params(k_params, D, H, V, M)
    params = prepare_params(raw_params)

    x = jax.random.normal(k_x, (B, S, D), jnp.float32)
    position_ids = jnp.broadcast_to(jnp.arange(S, dtype=jnp.int32), (B, S))
    add_activations = jax.random.normal(k_add, (D,), jnp.float32) * 0.1
    calc_dot_product_with = jax.random.normal(k_dot, (D,), jnp.float32)

    # Path 1: all branches (dot product + steering add + internal decodings; last-token
    #         decode folded into the batched unembed slab).
    out1, res1 = block_output_wrapper_forward(
        x, position_ids, params,
        add_activations=add_activations, after_position=None,
        calc_dot_product_with=calc_dot_product_with,
        save_internal_decodings=True)

    # Path 2: steering + decodings -> masked add fused into the MLP finalize epilogue.
    out2, res2 = block_output_wrapper_forward(
        x, position_ids, params,
        add_activations=add_activations, after_position=3,
        save_internal_decodings=True)

    # Path 3: plain block forward (no side tensors written at all).
    out3, res3 = block_output_wrapper_forward(x, position_ids, params)

    # Path 4: dot-product branch only (single-row norm+unembed decode).
    out4, res4 = block_output_wrapper_forward(
        x, position_ids, params, calc_dot_product_with=calc_dot_product_with)

    jax.block_until_ready((out1, res1, out2, res2, out3, out4, res4))
    print("KERNEL_OK")
</pallas_src>

<mosaic_0001>
module attributes {stable_mosaic.version = 11 : i64} {
  func.func @_rms_matmul_kernel(%arg0: i32, %arg1: i32, %arg2: memref<16x256xf32, #tpu.memory_space<vmem>>, %arg3: memref<1x256xf32, #tpu.memory_space<vmem>>, %arg4: memref<256x256xbf16, #tpu.memory_space<vmem>>, %arg5: memref<16x256xbf16, #tpu.memory_space<vmem>>, %arg6: memref<16x256xbf16, #tpu.memory_space<vmem>>) attributes {dimension_semantics = [#tpu.dimension_semantics<parallel>, #tpu.dimension_semantics<arbitrary>], iteration_bounds = array<i64: 1, 3>, scalar_prefetch = 0 : i64, scratch_operands = 1 : i64, tpu.core_type = #tpu.core_type<tc>, window_params = [{transform_indices = @transform_0, window_bounds = array<i64: 16, 256>}, {pipeline_mode = #tpu.pipeline_mode<synchronous>, transform_indices = @transform_1, window_bounds = array<i64: 1, 256>}, {transform_indices = @transform_2, window_bounds = array<i64: 256, 256>}, {transform_indices = @transform_3, window_bounds = array<i64: 16, 256>}]} {
    %c0_i32 = arith.constant 0 : i32
    %0 = arith.cmpi eq, %arg1, %c0_i32 : i32
    %1 = arith.extui %0 : i1 to i32
    %c0_i32_0 = arith.constant 0 : i32
    %2 = arith.cmpi ne, %1, %c0_i32_0 : i32
    scf.if %2 {
      %c0_6 = arith.constant 0 : index
      %c0_7 = arith.constant 0 : index
      %8 = vector.load %arg2[%c0_6, %c0_7] : memref<16x256xf32, #tpu.memory_space<vmem>>, vector<16x256xf32>
      %9 = arith.mulf %8, %8 : vector<16x256xf32>
      %cst_8 = arith.constant dense<0.000000e+00> : vector<16xf32>
      %10 = vector.multi_reduction <add>, %9, %cst_8 [1] : vector<16x256xf32> to vector<16xf32>
      %11 = vector.shape_cast %10 : vector<16xf32> to vector<16x1xf32>
      %cst_9 = arith.constant 2.560000e+02 : f32
      %12 = vector.broadcast %cst_9 : f32 to vector<16x1xf32>
      %13 = arith.divf %11, %12 : vector<16x1xf32>
      %cst_10 = arith.constant 9.99999997E-7 : f32
      %14 = vector.broadcast %cst_10 : f32 to vector<16x1xf32>
      %15 = arith.addf %13, %14 : vector<16x1xf32>
      %16 = math.rsqrt %15 : vector<16x1xf32>
      %17 = vector.broadcast %16 : vector<16x1xf32> to vector<16x256xf32>
      %18 = arith.mulf %8, %17 : vector<16x256xf32>
      %c0_11 = arith.constant 0 : index
      %c0_12 = arith.constant 0 : index
      %19 = vector.load %arg3[%c0_11, %c0_12] : memref<1x256xf32, #tpu.memory_space<vmem>>, vector<1x256xf32>
      %20 = vector.broadcast %19 : vector<1x256xf32> to vector<16x256xf32>
      %21 = arith.mulf %18, %20 : vector<16x256xf32>
      %22 = arith.truncf %21 : vector<16x256xf32> to vector<16x256xbf16>
      %c0_13 = arith.constant 0 : index
      %c0_14 = arith.constant 0 : index
      %23 = vector.load %arg6[%c0_13, %c0_14] : memref<16x256xbf16, #tpu.memory_space<vmem>>, vector<16x256xbf16>
      tpu.vector_store %arg6[%c0_13, %c0_14], %22 {strides = array<i32>} : memref<16x256xbf16, #tpu.memory_space<vmem>>, vector<16x256xbf16>,
    } else {
    }
    %c0 = arith.constant 0 : index
    %c0_1 = arith.constant 0 : index
    %3 = vector.load %arg6[%c0, %c0_1] : memref<16x256xbf16, #tpu.memory_space<vmem>>, vector<16x256xbf16>
    %c0_2 = arith.constant 0 : index
    %c0_3 = arith.constant 0 : index
    %4 = vector.load %arg4[%c0_2, %c0_3] : memref<256x256xbf16, #tpu.memory_space<vmem>>, vector<256x256xbf16>
    %cst = arith.constant dense<0.000000e+00> : vector<16x256xf32>
    %5 = tpu.matmul %3, %4, %cst {dimension_numbers = #tpu.dot_dimension_numbers<[1], [0], [0], [1], [0, 0, 1, 1], [], []>} : vector<16x256xbf16>, vector<256x256xbf16>, vector<16x256xf32> -> vector<16x256xf32>
    %6 = arith.truncf %5 : vector<16x256xf32> to vector<16x256xbf16>
    %c0_4 = arith.constant 0 : index
    %c0_5 = arith.constant 0 : index
    %7 = vector.load %arg5[%c0_4, %c0_5] : memref<16x256xbf16, #tpu.memory_space<vmem>>, vector<16x256xbf16>
    tpu.vector_store %arg5[%c0_4, %c0_5], %6 {strides = array<i32>} : memref<16x256xbf16, #tpu.memory_space<vmem>>, vector<16x256xbf16>,
    return
  }
  func.func @transform_0(%arg0: i32, %arg1: i32) -> (i32, i32) {
    %c0_i32 = arith.constant 0 : i32
    %c0_i32_0 = arith.constant 0 : i32
    return %arg0, %c0_i32 : i32, i32
  }
  func.func @transform_1(%arg0: i32, %arg1: i32) -> (i32, i32) {
    %c0_i32 = arith.constant 0 : i32
    %c0_i32_0 = arith.constant 0 : i32
    %c0_i32_1 = arith.constant 0 : i32
    return %c0_i32, %c0_i32_0 : i32, i32
  }
  func.func @transform_2(%arg0: i32, %arg1: i32) -> (i32, i32) {
    %c0_i32 = arith.constant 0 : i32
    %c0_i32_0 = arith.constant 0 : i32
    return %c0_i32, %arg1 : i32, i32
  }
  func.func @transform_3(%arg0: i32, %arg1: i32) -> (i32, i32) {
    %c0_i32 = arith.constant 0 : i32
    return %arg0, %arg1 : i32, i32
  }
}

</mosaic_0001>

<llo_original>
// kernel: tpu_custom_call.1
$region0: #{tpu_custom_call.1}
  #allocation0 [shape = 'u32[]', space=smem, size = 0x4, offset = 0x4, fixed_abs, tag = 'smem constant byte address 0x4 - core index']
  #allocation1 [shape = 'u32[144,128]{1,0:T(1,128)}', space=vmem, size = 0x12000, scoped, tag = 'internal scratch']
  #allocation2 [shape = 'bf16[16,256]{1,0:T(16,128)(2,1)}', space=vmem, size = 0x2000, scoped, tag = 'scratch operand']
  %s0 = inlined_call_operand.hbm [shape: f32[16,256], index: 0, kind: input, shape index: {}]
  %s1 = inlined_call_operand.hbm [shape: f32[1,256], index: 1, kind: input, shape index: {}]
  %s2 = inlined_call_operand.hbm [shape: bf16[256,768], index: 2, kind: input, shape index: {}]
  %s3 = inlined_call_operand.hbm [shape: bf16[16,768], index: 3, kind: output, shape index: {}]
  %s4 = sld [smem:[#allocation0]]
  $region61: #{tpu_custom_call.1} parent=0
    _
  %s6 = ssub.s32 1, %s4
  %s7 = scalar_select 0, %s6, %s4
  $region1: #{tpu_custom_call.1} parent=0
    #allocation3 [shape = 'u8[16384]{0}', space=vmem, size = 0x4000, scoped, tag = 'input window, operand 0, single buffered']
    #allocation4 [shape = 's32[2]{0}', space=sflag, size = 0x8, scoped, tag = 'scoped memory for tpu_custom_call.1']
    #allocation5 [shape = 's32[2]{0}', space=sflag, size = 0x8, scoped, tag = 'scoped memory for tpu_custom_call.1']
    #allocation6 [shape = 'u8[1024]{0}', space=vmem, size = 0x400, scoped, tag = 'input window, operand 1, single buffered']
    #allocation7 [shape = 's32[1]{0}', space=sflag, size = 0x4, scoped, tag = 'scoped memory for tpu_custom_call.1']
    #allocation8 [shape = 'u8[262144]{0}', space=vmem, size = 0x40000, scoped, tag = 'input window, operand 2']
    #allocation9 [shape = 'u8[16384]{0}', space=vmem, size = 0x4000, scoped, tag = 'output window, operand 0']
    %8 = vsyncpa [#allocation4], 0
    %9 = vsyncpa [#allocation7], 0
    %10 = vsyncpa [#allocation5], 0
    %s11 = scalar_lea.sflag [#allocation5], 1
    %12 = vsyncpa %s11, 0
    loop: start=0, step=1, limit=5
    $region2: #{tpu_custom_call.1} parent=1 // loop_pre_header
      _
    $region3: #{tpu_custom_call.1} parent=1 // loop_header
      %s14 = sphi 0, %s18
      %p15 = scmp.ge.s32.totalorder %s14, 5
      %s21 = sphi 0, %s33
      %s22 = sphi 0, %s29
      %s23 = sphi 0, %s21
      %s24 = sphi 0, %s22
      %s25 = sphi 0, %s23
      %s26 = sphi 0, %s24
      %s36 = sphi 0, %s38
      %s39 = sphi 0, %s36
      %s40 = sphi 0, %s39
      %s56 = sphi 0, %s40
      %s60 = sphi 0, %s60
      %s62 = sphi 0, %s60
      %s63 = sphi 0, %s62
      %s77 = sphi 0, %s63
      %s83 = sphi 0, %s85
      %s86 = sphi 0, %s83
      %s87 = sphi 0, %s86
      %s103 = sphi 0, %s87
      %s111 = sphi 0, %s113
      %s114 = sphi 0, %s111
      %s115 = sphi 0, %s114
      %s131 = sphi 0, %s115
    $region4: #{tpu_custom_call.1} parent=1 // loop_header_branch
      %17 = sbr.rel (%p15) target = $region8
    $region5: #{tpu_custom_call.1} parent=1 // loop_body
      %s19 = ssub.s32 %s14, 1
      %s20 = ssub.s32 %s14, 2
      %s27 = sadd.s32 1, %s22
      %p28 = scmp.ge.s32.totalorder %s27, 3
      %s29 = scalar_select %p28, 0, %s27
      %s30 = sadd.s32 1, %s21
      %s31 = scalar_select %p28, %s30, %s21
      %p32 = scmp.ge.s32.totalorder %s31, 1
      %s33 = scalar_select %p32, 0, %s31
      %s34 = ssub.s32 %s21, %s33
      %p35 = scmp.eq.s32.totalorder %s34, 0
      %s37 = sadd.s32 %s36, 1
      %s38 = scalar_select %p35, %s36, %s37
      %p41 = pneg %p35
      %p42 = scmp.eq.s32.totalorder %s14, 2
      %p43 = por %p41, %p42
      %p44 = scmp.ne.s32.totalorder %s36, %s39
      %p45 = scmp.eq.s32.totalorder %s14, 0
      %p46 = por %p44, %p45
      %p47 = scmp.ne.s32.totalorder %s36, %s39
      %p48 = scmp.eq.s32.totalorder %s19, 2
      %p49 = por %p47, %p48
      %p50 = scmp.ne.s32.totalorder %s39, %s40
      %p51 = scmp.eq.s32.totalorder %s19, 0
      %p52 = por %p50, %p51
      %p53 = scmp.ne.s32.totalorder %s39, %s40
      %p54 = scmp.eq.s32.totalorder %s20, 2
      %p55 = por %p53, %p54
      %p57 = scmp.ne.s32.totalorder %s40, %s56
      %p58 = scmp.eq.s32.totalorder %s20, 0
      %p59 = por %p57, %p58
      %s61 = sadd.s32 %s60, 1
      %p64 = scmp.eq.s32.totalorder %s14, 2
      %p65 = scmp.ne.s32.totalorder %s60, %s62
      %p66 = scmp.eq.s32.totalorder %s14, 0
      %p67 = por %p65, %p66
      %p68 = scmp.ne.s32.totalorder %s60, %s62
      %p69 = scmp.eq.s32.totalorder %s19, 2
      %p70 = por %p68, %p69
      %p71 = scmp.ne.s32.totalorder %s62, %s63
      %p72 = scmp.eq.s32.totalorder %s19, 0
      %p73 = por %p71, %p72
      %p74 = scmp.ne.s32.totalorder %s62, %s63
      %p75 = scmp.eq.s32.totalorder %s20, 2
      %p76 = por %p74, %p75
      %p78 = scmp.ne.s32.totalorder %s63, %s77
      %p79 = scmp.eq.s32.totalorder %s20, 0
      %p80 = por %p78, %p79
      %s81 = ssub.s32 %s22, %s29
      %p82 = scmp.eq.s32.totalorder %s81, 0
      %s84 = sadd.s32 %s83, 1
      %s85 = scalar_select %p82, %s83, %s84
      %p88 = pneg %p82
      %p89 = scmp.eq.s32.totalorder %s14, 2
      %p90 = por %p88, %p89
      %p91 = scmp.ne.s32.totalorder %s83, %s86
      %p92 = scmp.eq.s32.totalorder %s14, 0
      %p93 = por %p91, %p92
      %p94 = scmp.ne.s32.totalorder %s83, %s86
      %p95 = scmp.eq.s32.totalorder %s19, 2
      %p96 = por %p94, %p95
      %p97 = scmp.ne.s32.totalorder %s86, %s87
      %p98 = scmp.eq.s32.totalorder %s19, 0
      %p99 = por %p97, %p98
      %p100 = scmp.ne.s32.totalorder %s86, %s87
      %p101 = scmp.eq.s32.totalorder %s20, 2
      %p102 = por %p100, %p101
      %p104 = scmp.ne.s32.totalorder %s87, %s103
      %p105 = scmp.eq.s32.totalorder %s20, 0
      %p106 = por %p104, %p105
      %s107 = ssub.s32 %s21, %s33
      %s108 = ssub.s32 %s22, %s29
      %s109 = sor.u32 %s107, %s108
      %p110 = scmp.eq.s32.totalorder %s109, 0
      %s112 = sadd.s32 %s111, 1
      %s113 = scalar_select %p110, %s111, %s112
      %p116 = pneg %p110
      %p117 = scmp.eq.s32.totalorder %s14, 2
      %p118 = por %p116, %p117
      %p119 = scmp.ne.s32.totalorder %s111, %s114
      %p120 = scmp.eq.s32.totalorder %s14, 0
      %p121 = por %p119, %p120
      %p122 = scmp.ne.s32.totalorder %s111, %s114
      %p123 = scmp.eq.s32.totalorder %s19, 2
      %p124 = por %p122, %p123
      %p125 = scmp.ne.s32.totalorder %s114, %s115
      %p126 = scmp.eq.s32.totalorder %s19, 0
      %p127 = por %p125, %p126
      %p128 = scmp.ne.s32.totalorder %s114, %s115
      %p129 = scmp.eq.s32.totalorder %s20, 2
      %p130 = por %p128, %p129
      %p132 = scmp.ne.s32.totalorder %s115, %s131
      %p133 = scmp.eq.s32.totalorder %s20, 0
      %p134 = por %p132, %p133
      %p135 = scmp.le.s32.totalorder 1, %s14
      %p136 = scmp.lt.s32.totalorder %s14, 4
      %p137 = pnand %p135, %p136
      %p138 = pneg %p137
      // Predicated region
      $region9: #{tpu_custom_call.1} parent=5 // pred_check
        _
      $region10: #{tpu_custom_call.1} parent=5 // pred_check_branch
        %140 = sbr.rel (%p137) target = $region12
      $region11: #{tpu_custom_call.1} parent=5 // pred_region
        %s141 = ssub.s32 %s14, 1
        // Predicated region
        $region13: #{tpu_custom_call.1} parent=11 // pred_check
          %p142 = pneg %p52
        $region14: #{tpu_custom_call.1} parent=11 // pred_check_branch
          %144 = sbr.rel (%p142) target = $region16
        $region15: #{tpu_custom_call.1} parent=11 // pred_region
          %s145 = smul.u32 2, %s23
          %s147 = ssub.s32 512, 512
          %148 = vsyncadd [#allocation4], %s147
          %s149 = smul.addr %s145, 2
          %s150 = smul.addr %s149, 128
          %s151 = scalar_lea.hbm %s0, %s150
          %s152 = sshll.u32 [#allocation3], 4
          %s153 = int_to_ptr.vmem [resolvable:$true] %s152
          %158 = dma.hbm_to_vmem [thread:$0]  %s151, 512, %s153, [#allocation4], 256, 256, 16
        $region16: #{tpu_custom_call.1} parent=11 // pred_fallthru
          _
        // Predicated region
        $region17: #{tpu_custom_call.1} parent=11 // pred_check
          %p159 = pneg %p73
        $region18: #{tpu_custom_call.1} parent=11 // pred_check_branch
          %161 = sbr.rel (%p159) target = $region20
        $region19: #{tpu_custom_call.1} parent=11 // pred_region
          %s163 = ssub.s32 32, 32
          %164 = vsyncadd [#allocation7], %s163
          %s166 = sshll.u32 [#allocation6], 4
          %s167 = int_to_ptr.vmem [resolvable:$true] %s166
          %169 = dma.hbm_to_vmem [thread:$0]  %s1, 32, %s167, [#allocation7]
        $region20: #{tpu_custom_call.1} parent=11 // pred_fallthru
          _
      $region12: #{tpu_custom_call.1} parent=5 // pred_fallthru
        _
      %p170 = scmp.lt.s32.totalorder %s14, 3
      // Predicated region
      $region21: #{tpu_custom_call.1} parent=5 // pred_check
        %p171 = pneg %p170
      $region22: #{tpu_custom_call.1} parent=5 // pred_check_branch
        %173 = sbr.rel (%p171) target = $region24
      $region23: #{tpu_custom_call.1} parent=5 // pred_region
        // Predicated region
        $region25: #{tpu_custom_call.1} parent=23 // pred_check
          %p174 = pneg %p93
        $region26: #{tpu_custom_call.1} parent=23 // pred_check_branch
          %176 = sbr.rel (%p174) target = $region28
        $region27: #{tpu_custom_call.1} parent=23 // pred_region
          %s177 = sand.u32 %s14, 1
          %s178 = scalar_lea.sflag [#allocation4], %s177
          %s179 = sand.u32 %s83, 1
          %s180 = smul.addr %s179, 256
          %s181 = scalar_lea.vmem [#allocation8], %s180
          %s182 = smul.u32 2, %s22
          %s184 = ssub.s32 4096, 4096
          %185 = vsyncadd %s178, %s184
          %s186 = smul.addr %s182, 64
          %s187 = scalar_lea.hbm %s2, %s186
          %s188 = sshll.u32 %s181, 4
          %s189 = int_to_ptr.vmem [resolvable:$true] %s188
          %194 = dma.hbm_to_vmem [thread:$0]  %s187, 4096, %s189, %s178, 384, 128, 8
        $region28: #{tpu_custom_call.1} parent=23 // pred_fallthru
          _
      $region24: #{tpu_custom_call.1} parent=5 // pred_fallthru
        _
      %p195 = scmp.le.s32.totalorder 1, %s14
      %p196 = scmp.lt.s32.totalorder %s14, 4
      %p197 = pnand %p195, %p196
      %p198 = pneg %p197
      // Predicated region
      $region29: #{tpu_custom_call.1} parent=5 // pred_check
        _
      $region30: #{tpu_custom_call.1} parent=5 // pred_check_branch
        %200 = sbr.rel (%p197) target = $region32
      $region31: #{tpu_custom_call.1} parent=5 // pred_region
        %s201 = ssub.s32 %s14, 1
        // Predicated region
        $region33: #{tpu_custom_call.1} parent=31 // pred_check
          %p202 = pneg %p52
        $region34: #{tpu_custom_call.1} parent=31 // pred_check_branch
          %204 = sbr.rel (%p202) target = $region36
        $region35: #{tpu_custom_call.1} parent=31 // pred_region
          %205 = dma.done [#allocation4], 512
        $region36: #{tpu_custom_call.1} parent=31 // pred_fallthru
          _
        // Predicated region
        $region37: #{tpu_custom_call.1} parent=31 // pred_check
          %p206 = pneg %p73
        $region38: #{tpu_custom_call.1} parent=31 // pred_check_branch
          %208 = sbr.rel (%p206) target = $region40
        $region39: #{tpu_custom_call.1} parent=31 // pred_region
          %209 = dma.done [#allocation7], 32
        $region40: #{tpu_custom_call.1} parent=31 // pred_fallthru
          _
        %s210 = sand.u32 %s19, 1
        %s211 = scalar_lea.sflag [#allocation4], %s210
        %s212 = sand.u32 %s86, 1
        %s213 = smul.addr %s212, 256
        %s214 = scalar_lea.vmem [#allocation8], %s213
        // Predicated region
        $region41: #{tpu_custom_call.1} parent=31 // pred_check
          %p215 = pneg %p99
        $region42: #{tpu_custom_call.1} parent=31 // pred_check_branch
          %217 = sbr.rel (%p215) target = $region44
        $region43: #{tpu_custom_call.1} parent=31 // pred_region
          %218 = dma.done %s211, 4096
        $region44: #{tpu_custom_call.1} parent=31 // pred_fallthru
          _
        %p219 = pneg %p52
        %p220 = pneg %p49
        %p221 = pneg %p73
        %p222 = pneg %p70
        %s223 = sand.u32 %s19, 1
        %s224 = scalar_lea.sflag [#allocation4], %s223
        %s225 = sand.u32 %s86, 1
        %s226 = smul.addr %s225, 256
        %s227 = scalar_lea.vmem [#allocation8], %s226
        %p228 = pneg %p99
        %p229 = pneg %p96
        %p230 = pneg %p127
        %p231 = pneg %p124
        %s232 = sand.u32 %s114, 1
        %s233 = scalar_lea.sflag [#allocation5], %s232
        %s234 = sand.u32 %s114, 1
        %s235 = smul.addr %s234, 16
        %s236 = scalar_lea.vmem [#allocation9], %s235
        %s237 = smul.u32 2, %s23
        %s238 = smul.u32 2, %s24
        %s239 = smul.u32 2, %s23
        %s240 = smul.u32 2, %s24
        %p241 = scmp.eq.s32.totalorder %s24, 0
        // Predicated region
        $region45: #{tpu_custom_call.1} parent=31 // pred_check
          %p242 = pneg %p241
        $region46: #{tpu_custom_call.1} parent=31 // pred_check_branch
          %244 = sbr.rel (%p242) target = $region48
        $region47: #{tpu_custom_call.1} parent=31 // pred_region
          %v245 = vld [vmem:[#allocation3] sm:$0xff]
          %v246 = vld [vmem:[#allocation3 + $0x8] sm:$0xff]
          %v247 = vld [vmem:[#allocation3 + $0x10] sm:$0xff]
          %v248 = vld [vmem:[#allocation3 + $0x18] sm:$0xff]
          %v249 = vmul.f32 %v245, %v245
          %v250 = vmul.f32 %v246, %v246
          %v251 = vmul.f32 %v247, %v247
          %v252 = vmul.f32 %v248, %v248
          %v253 = vadd.f32 %v249, %v250
          %254 = vadd.xlane.f32.xlu0 %v253
          %v255 = vpop.xlane.xlu0 %254
          %v256 = vadd.f32 %v251, %v252
          %257 = vadd.xlane.f32.xlu0 %v256
          %v258 = vpop.xlane.xlu0 %257
          %v259 = vrcp.pop 256.0
          %v260 = vmul.f32 %v255, %v259
          %v261 = vmul.f32 %v258, %v259
          %v262 = vadd.f32 %v260, 1e-06
          %v263 = vadd.f32 %v261, 1e-06
          %v264 = vrsqrt.pop %v262
          %v265 = vrsqrt.pop %v263
          %v266 = vmul.f32 %v245, %v264
          %v267 = vmul.f32 %v246, %v264
          %v268 = vmul.f32 %v247, %v265
          %v269 = vmul.f32 %v248, %v265
          %v270 = vld [vmem:[#allocation6] sm:$0x3]
          %v272 = vlaneseq
          %v273 = vshrl.u32 %v272, 7
          %v274 = vsub.s32 0, %v273
          %v275 = vrot.slane %v270, %v274
          %v276 = vlaneseq
          %v277 = vshrl.u32 %v276, 7
          %v278 = vsub.s32 1, %v277
          %v279 = vrot.slane %v270, %v278
          %v282 = vmul.f32 %v266, %v275
          %v283 = vmul.f32 %v267, %v279
          %v284 = vmul.f32 %v268, %v275
          %v285 = vmul.f32 %v269, %v279
          %v286 = vpack.c.bf16 %v284, %v282
          %v287 = vpack.c.bf16 %v285, %v283
          %288 = vst [vmem:[#allocation2] sm:$0xff] %v286
          %289 = vst [vmem:[#allocation2 + $0x8] sm:$0xff] %v287
        $region48: #{tpu_custom_call.1} parent=31 // pred_fallthru
          _
        %v290 = vld [vmem:[#allocation2] sm:$0xff]
        %v291 = vld [vmem:[#allocation2 + $0x8] sm:$0xff]
        %v292 = vld [vmem:[%s214] sm:$0xff]
        %v293 = vld [vmem:[%s214 + $0x8] sm:$0xff]
        %v294 = vld [vmem:[%s214 + $0x10] sm:$0xff]
        %v295 = vld [vmem:[%s214 + $0x18] sm:$0xff]
        %v296 = vld [vmem:[%s214 + $0x20] sm:$0xff]
        %v297 = vld [vmem:[%s214 + $0x28] sm:$0xff]
        %v298 = vld [vmem:[%s214 + $0x30] sm:$0xff]
        %v299 = vld [vmem:[%s214 + $0x38] sm:$0xff]
        %v300 = vld [vmem:[%s214 + $0x40] sm:$0xff]
        %v301 = vld [vmem:[%s214 + $0x48] sm:$0xff]
        %v302 = vld [vmem:[%s214 + $0x50] sm:$0xff]
        %v303 = vld [vmem:[%s214 + $0x58] sm:$0xff]
        %v304 = vld [vmem:[%s214 + $0x60] sm:$0xff]
        %v305 = vld [vmem:[%s214 + $0x68] sm:$0xff]
        %v306 = vld [vmem:[%s214 + $0x70] sm:$0xff]
        %v307 = vld [vmem:[%s214 + $0x78] sm:$0xff]
        %v308 = vld [vmem:[%s214 + $0x80] sm:$0xff]
        %v309 = vld [vmem:[%s214 + $0x88] sm:$0xff]
        %v310 = vld [vmem:[%s214 + $0x90] sm:$0xff]
        %v311 = vld [vmem:[%s214 + $0x98] sm:$0xff]
        %v312 = vld [vmem:[%s214 + $0xa0] sm:$0xff]
        %v313 = vld [vmem:[%s214 + $0xa8] sm:$0xff]
        %v314 = vld [vmem:[%s214 + $0xb0] sm:$0xff]
        %v315 = vld [vmem:[%s214 + $0xb8] sm:$0xff]
        %v316 = vld [vmem:[%s214 + $0xc0] sm:$0xff]
        %v317 = vld [vmem:[%s214 + $0xc8] sm:$0xff]
        %v318 = vld [vmem:[%s214 + $0xd0] sm:$0xff]
        %v319 = vld [vmem:[%s214 + $0xd8] sm:$0xff]
        %v320 = vld [vmem:[%s214 + $0xe0] sm:$0xff]
        %v321 = vld [vmem:[%s214 + $0xe8] sm:$0xff]
        %v322 = vld [vmem:[%s214 + $0xf0] sm:$0xff]
        %v323 = vld [vmem:[%s214 + $0xf8] sm:$0xff]
        %v356 = vunpack.c.l.b16 %v292
        %v357 = vunpack.c.h.b16 %v292
        %v358 = vunpack.c.l.b16 %v293
        %v359 = vunpack.c.h.b16 %v293
        %v360 = vunpack.c.l.b16 %v294
        %v361 = vunpack.c.h.b16 %v294
        %v362 = vunpack.c.l.b16 %v295
        %v363 = vunpack.c.h.b16 %v295
        %v364 = vunpack.c.l.b16 %v296
        %v365 = vunpack.c.h.b16 %v296
        %v366 = vunpack.c.l.b16 %v297
        %v367 = vunpack.c.h.b16 %v297
        %v368 = vunpack.c.l.b16 %v298
        %v369 = vunpack.c.h.b16 %v298
        %v370 = vunpack.c.l.b16 %v299
        %v371 = vunpack.c.h.b16 %v299
        %v372 = vunpack.c.l.b16 %v300
        %v373 = vunpack.c.h.b16 %v300
        %v374 = vunpack.c.l.b16 %v301
        %v375 = vunpack.c.h.b16 %v301
        %v376 = vunpack.c.l.b16 %v302
        %v377 = vunpack.c.h.b16 %v302
        %v378 = vunpack.c.l.b16 %v303
        %v379 = vunpack.c.h.b16 %v303
        %v380 = vunpack.c.l.b16 %v304
        %v381 = vunpack.c.h.b16 %v304
        %v382 = vunpack.c.l.b16 %v305
        %v383 = vunpack.c.h.b16 %v305
        %v384 = vunpack.c.l.b16 %v306
        %v385 = vunpack.c.h.b16 %v306
        %v386 = vunpack.c.l.b16 %v307
        %v387 = vunpack.c.h.b16 %v307
        %v388 = vunpack.c.l.b16 %v308
        %v389 = vunpack.c.h.b16 %v308
        %v390 = vunpack.c.l.b16 %v309
        %v391 = vunpack.c.h.b16 %v309
        %v392 = vunpack.c.l.b16 %v310
        %v393 = vunpack.c.h.b16 %v310
        %v394 = vunpack.c.l.b16 %v311
        %v395 = vunpack.c.h.b16 %v311
        %v396 = vunpack.c.l.b16 %v312
        %v397 = vunpack.c.h.b16 %v312
        %v398 = vunpack.c.l.b16 %v313
        %v399 = vunpack.c.h.b16 %v313
        %v400 = vunpack.c.l.b16 %v314
        %v401 = vunpack.c.h.b16 %v314
        %v402 = vunpack.c.l.b16 %v315
        %v403 = vunpack.c.h.b16 %v315
        %v404 = vunpack.c.l.b16 %v316
        %v405 = vunpack.c.h.b16 %v316
        %v406 = vunpack.c.l.b16 %v317
        %v407 = vunpack.c.h.b16 %v317
        %v408 = vunpack.c.l.b16 %v318
        %v409 = vunpack.c.h.b16 %v318
        %v410 = vunpack.c.l.b16 %v319
        %v411 = vunpack.c.h.b16 %v319
        %v412 = vunpack.c.l.b16 %v320
        %v413 = vunpack.c.h.b16 %v320
        %v414 = vunpack.c.l.b16 %v321
        %v415 = vunpack.c.h.b16 %v321
        %v416 = vunpack.c.l.b16 %v322
        %v417 = vunpack.c.h.b16 %v322
        %v418 = vunpack.c.l.b16 %v323
        %v419 = vunpack.c.h.b16 %v323
        %v420 = vpack.c.b16 %v358, %v356
        %v421 = vpack.c.b16 %v359, %v357
        %v422 = vpack.c.b16 %v362, %v360
        %v423 = vpack.c.b16 %v363, %v361
        %v424 = vpack.c.b16 %v366, %v364
        %v425 = vpack.c.b16 %v367, %v365
        %v426 = vpack.c.b16 %v370, %v368
        %v427 = vpack.c.b16 %v371, %v369
        %v428 = vpack.c.b16 %v374, %v372
        %v429 = vpack.c.b16 %v375, %v373
        %v430 = vpack.c.b16 %v378, %v376
        %v431 = vpack.c.b16 %v379, %v377
        %v432 = vpack.c.b16 %v382, %v380
        %v433 = vpack.c.b16 %v383, %v381
        %v434 = vpack.c.b16 %v386, %v384
        %v435 = vpack.c.b16 %v387, %v385
        %v436 = vpack.c.b16 %v390, %v388
        %v437 = vpack.c.b16 %v391, %v389
        %v438 = vpack.c.b16 %v394, %v392
        %v439 = vpack.c.b16 %v395, %v393
        %v440 = vpack.c.b16 %v398, %v396
        %v441 = vpack.c.b16 %v399, %v397
        %v442 = vpack.c.b16 %v402, %v400
        %v443 = vpack.c.b16 %v403, %v401
        %v444 = vpack.c.b16 %v406, %v404
        %v445 = vpack.c.b16 %v407, %v405
        %v446 = vpack.c.b16 %v410, %v408
        %v447 = vpack.c.b16 %v411, %v409
        %v448 = vpack.c.b16 %v414, %v412
        %v449 = vpack.c.b16 %v415, %v413
        %v450 = vpack.c.b16 %v418, %v416
        %v451 = vpack.c.b16 %v419, %v417
        %484 = vmatprep.subr.bf16.mxu0 %v421
        %485 = vmatpush1.bf16.msra.mxu0 %v420
        %486 = vmatprep.subr.bf16.mxu0 %v423
        %487 = vmatpush1.bf16.msra.mxu0 %v422
        %488 = vmatprep.subr.bf16.mxu0 %v425
        %489 = vmatpush1.bf16.msra.mxu0 %v424
        %490 = vmatprep.subr.bf16.mxu0 %v427
        %491 = vmatpush1.bf16.msra.mxu0 %v426
        %492 = vmatprep.subr.bf16.mxu0 %v429
        %493 = vmatpush1.bf16.msra.mxu0 %v428
        %494 = vmatprep.subr.bf16.mxu0 %v431
        %495 = vmatpush1.bf16.msra.mxu0 %v430
        %496 = vmatprep.subr.bf16.mxu0 %v433
        %497 = vmatpush1.bf16.msra.mxu0 %v432
        %498 = vmatprep.subr.bf16.mxu0 %v435
        %499 = vmatpush1.bf16.msra.mxu0 %v434
        %500 = vmatprep.subr.bf16.mxu0 %v437
        %501 = vmatpush1.bf16.msra.mxu0 %v436
        %502 = vmatprep.subr.bf16.mxu0 %v439
        %503 = vmatpush1.bf16.msra.mxu0 %v438
        %504 = vmatprep.subr.bf16.mxu0 %v441
        %505 = vmatpush1.bf16.msra.mxu0 %v440
        %506 = vmatprep.subr.bf16.mxu0 %v443
        %507 = vmatpush1.bf16.msra.mxu0 %v442
        %508 = vmatprep.subr.bf16.mxu0 %v445
        %509 = vmatpush1.bf16.msra.mxu0 %v444
        %510 = vmatprep.subr.bf16.mxu0 %v447
        %511 = vmatpush1.bf16.msra.mxu0 %v446
        %512 = vmatprep.subr.bf16.mxu0 %v449
        %513 = vmatpush1.bf16.msra.mxu0 %v448
        %514 = vmatprep.subr.bf16.mxu0 %v451
        %515 = vmatpush1.bf16.msra.mxu0 %v450
        %516 = vmatprep.mubr.bf16.mxu0 %v291
        %517 = vmatmul.mubr.bf16.gmra.mrb[0].mxu0 %v290
        %v518 = vpop.f32.mrb[0].mxu0
        %v519 = vadd.f32 0.0, %v518
        %v520 = vpop.f32.mrb[0].mxu0
        %v521 = vadd.f32 0.0, %v520
        %v522 = vpop.f32.mrb[0].mxu0
        %v523 = vadd.f32 0.0, %v522
        %v524 = vpop.f32.mrb[0].mxu0
        %v525 = vadd.f32 0.0, %v524
        %526 = vdwg.mxu0
        %v527 = vpack.c.bf16 %v523, %v519
        %v528 = vpack.c.bf16 %v525, %v521
        %v531 = vunpack.c.l.b16 %v527
        %v532 = vunpack.c.l.b16 %v528
        %v533 = vunpack.c.h.b16 %v527
        %v534 = vunpack.c.h.b16 %v528
        %v535 = vpack.c.b16 %v532, %v531
        %v536 = vpack.c.b16 %v534, %v533
        %539 = vst [vmem:[%s236] sm:$0xff] %v535
        %540 = vst [vmem:[%s236 + $0x8] sm:$0xff] %v536
        %s541 = sand.u32 %s114, 1
        %s542 = scalar_lea.sflag [#allocation5], %s541
        %s543 = sand.u32 %s114, 1
        %s544 = smul.addr %s543, 16
        %s545 = scalar_lea.vmem [#allocation9], %s544
        // Predicated region
        $region49: #{tpu_custom_call.1} parent=31 // pred_check
          %p546 = pneg %p124
        $region50: #{tpu_custom_call.1} parent=31 // pred_check_branch
          %548 = sbr.rel (%p546) target = $region52
        $region51: #{tpu_custom_call.1} parent=31 // pred_region
          %s549 = smul.u32 2, %s23
          %s550 = smul.u32 2, %s24
          %s552 = ssub.s32 256, 256
          %553 = vsyncadd %s542, %s552
          %s554 = smul.addr %s549, 6
          %s555 = sadd.s32 %s550, %s554
          %s556 = smul.addr %s555, 64
          %s557 = scalar_lea.hbm %s3, %s556
          %s558 = sshll.u32 %s545, 4
          %s559 = int_to_ptr.vmem [resolvable:$true] %s558
          %564 = dma.vmem_to_hbm [thread:$0]  %s559, 256, %s557, %s542, 128, 384, 8
        $region52: #{tpu_custom_call.1} parent=31 // pred_fallthru
          _
      $region32: #{tpu_custom_call.1} parent=5 // pred_fallthru
        _
      %p565 = scmp.le.s32.totalorder 2, %s14
      // Predicated region
      $region53: #{tpu_custom_call.1} parent=5 // pred_check
        %p566 = pneg %p565
      $region54: #{tpu_custom_call.1} parent=5 // pred_check_branch
        %568 = sbr.rel (%p566) target = $region56
      $region55: #{tpu_custom_call.1} parent=5 // pred_region
        %s569 = ssub.s32 %s14, 2
        // Predicated region
        $region57: #{tpu_custom_call.1} parent=55 // pred_check
          %p570 = pneg %p130
        $region58: #{tpu_custom_call.1} parent=55 // pred_check_branch
          %572 = sbr.rel (%p570) target = $region60
        $region59: #{tpu_custom_call.1} parent=55 // pred_region
          %s573 = sand.u32 %s115, 1
          %s574 = scalar_lea.sflag [#allocation5], %s573
          %s575 = sand.u32 %s115, 1
          %s576 = smul.addr %s575, 16
          %s577 = scalar_lea.vmem [#allocation9], %s576
          %578 = dma.done %s574, 256
        $region60: #{tpu_custom_call.1} parent=55 // pred_fallthru
          _
      $region56: #{tpu_custom_call.1} parent=5 // pred_fallthru
        _
    $region6: #{tpu_custom_call.1} parent=1 // loop_footer
      %s18 = sadd.s32 1, %s14
    $region7: #{tpu_custom_call.1} parent=1 // loop_footer_branch
      %13 = sbr.rel target = $region3
    $region8: #{tpu_custom_call.1} parent=1 // loop_exit
      _
    %579 = vsyncpa [#allocation4], 1
    %s580 = scalar_lea.sflag [#allocation4], 1
    %581 = vsyncpa %s580, 1
    %582 = vsyncpa [#allocation7], 1
    %583 = vsyncpa [#allocation5], 1
    %s584 = scalar_lea.sflag [#allocation5], 1
    %585 = vsyncpa %s584, 1

</llo_original>
